<compile_context>
chip_gen: v5e
topology: v5e:2x2
jax: 0.10.0
libtpu: 0.0.40
codegen_flags: <defaults>
</compile_context>

<pallas_src>
import math
from collections import namedtuple

import jax
import jax.numpy as jnp
from jax.experimental import pallas as pl
from jax.experimental.pallas import tpu as pltpu

STOCHASTIC_DATA_FIELDS = ["z", "dist", "mean", "variance", "use_mode", "forced_latent"]
StochasticData = namedtuple(
    "StochasticData", STOCHASTIC_DATA_FIELDS, defaults=[None] * len(STOCHASTIC_DATA_FIELDS)
)

_TILE_K = 512          # K (reduction) tile when the fused weight is streamed
_RESIDENT_K_MAX = 4096  # largest D for which the fused weight stays fully resident


def _round_up(x, m):
    return ((x + m - 1) // m) * m


def _gaussian_stochastic_kernel(x_ref, w_ref, b_ref, eps_ref,
                                z_ref, mean_ref, var_ref, acc_ref):
    """Fused projection (bf16 MXU, f32 accum) + reparameterized Gaussian sample.

    Fused weight layout [TK, 2*Lp]:
      columns [0, Lp)    -> mean head
      columns [Lp, 2*Lp) -> 0.5 * logvar head   (the 0.5 is folded in at init)
    Grid: (batch tiles, K tiles); K is the reduction axis (last, "arbitrary").
    """
    k = pl.program_id(1)

    @pl.when(k == 0)
    def _init():
        acc_ref[...] = jnp.zeros_like(acc_ref)

    # f32 activations cast to bf16 on the VPU right before the MXU; a single
    # fused [TB, TK] x [TK, 2*Lp] pass (N = 2*Lp >= 256 fills the MXU).
    acc_ref[...] += jnp.dot(
        x_ref[...].astype(jnp.bfloat16), w_ref[...],
        preferred_element_type=jnp.float32)

    @pl.when(k == pl.num_programs(1) - 1)
    def _finalize():
        lp = z_ref.shape[1]
        y = acc_ref[...] + b_ref[...]
        mu = y[:, :lp]               # lane-aligned split (lp is a multiple of 128)
        std = jnp.exp(y[:, lp:])     # EUP; == exp(0.5 * logvar)
        z_ref[...] = mu + std * eps_ref[...]
        mean_ref[...] = mu
        var_ref[...] = std * std


def gaussian_stochastic_forward(x, w_fused_bf16, b_fused, rng_key, latent_features,
                                *, tile_b=128):
    """x: [B, D] f32; w_fused_bf16: [Dp, 2*Lp] bf16; b_fused: [1, 2*Lp] f32."""
    B, D = x.shape
    Dp, two_lp = w_fused_bf16.shape
    Lp = two_lp // 2
    L = latent_features

    # Batch tile: 128 keeps both v7x TensorCores fed for moderate B; rows are
    # rounded to the f32 sublane tile (8).
    TB = min(tile_b, _round_up(B, 8))
    Bp = _round_up(B, TB)

    # Reduction tile: fully resident weight for small D, streamed (TK, 2*Lp)
    # blocks for large D (Dp is padded at init to a multiple of _TILE_K then).
    TK = Dp if Dp <= _RESIDENT_K_MAX else _TILE_K
    nk = Dp // TK

    pad_b, pad_d = Bp - B, Dp - D
    xp = jnp.pad(x, ((0, pad_b), (0, pad_d))) if (pad_b or pad_d) else x

    # eps ~ N(0, 1) drawn on the host (the stateful TPU PRNG has no interpret
    # lowering); generated directly at the lane-padded shape -> no extra copy.
    eps = jax.random.normal(rng_key, (Bp, Lp), dtype=jnp.float32)

    out_block = pl.BlockSpec((TB, Lp), lambda i, k: (i, 0))

    # Per-step VMEM footprint (double-buffered streamed blocks + accumulator).
    itemsize = xp.dtype.itemsize
    vmem_bytes = (2 * TB * TK * itemsize        # x tiles
                  + 2 * TK * two_lp * 2         # bf16 weight tiles
                  + 2 * two_lp * 4              # bias
                  + 2 * TB * Lp * 4             # eps
                  + 3 * 2 * TB * Lp * 4         # z / mean / var outputs
                  + TB * two_lp * 4)            # f32 accumulator scratch
    vmem_limit = int(min(max(int(vmem_bytes * 1.3), 8 * 1024 * 1024),
                         60 * 1024 * 1024))

    z_p, mean_p, var_p = pl.pallas_call(
        _gaussian_stochastic_kernel,
        out_shape=(
            jax.ShapeDtypeStruct((Bp, Lp), jnp.float32),
            jax.ShapeDtypeStruct((Bp, Lp), jnp.float32),
            jax.ShapeDtypeStruct((Bp, Lp), jnp.float32),
        ),
        grid_spec=pltpu.PrefetchScalarGridSpec(
            num_scalar_prefetch=0,
            grid=(Bp // TB, nk),
            in_specs=[
                pl.BlockSpec((TB, TK), lambda i, k: (i, k)),       # x (f32, streamed)
                pl.BlockSpec((TK, two_lp), lambda i, k: (k, 0)),   # fused bf16 weight
                pl.BlockSpec((1, two_lp), lambda i, k: (0, 0)),    # fused bias (resident)
                pl.BlockSpec((TB, Lp), lambda i, k: (i, 0)),       # eps
            ],
            out_specs=(out_block, out_block, out_block),
            scratch_shapes=[pltpu.VMEM((TB, two_lp), jnp.float32)],
        ),
        compiler_params=pltpu.CompilerParams(
            dimension_semantics=("parallel", "arbitrary"),
            vmem_limit_bytes=vmem_limit,
        ),
        cost_estimate=pl.CostEstimate(
            flops=2 * Bp * Dp * two_lp,
            transcendentals=Bp * Lp,  # exp only
            bytes_accessed=(Bp * Dp * itemsize
                            + (Bp // TB) * Dp * two_lp * 2
                            + two_lp * 4
                            + Bp * Lp * 4
                            + 3 * Bp * Lp * 4),
        ),
    )(xp, w_fused_bf16, b_fused, eps)

    # Skip the post-kernel slice copies entirely when no padding was applied.
    if Bp != B or Lp != L:
        z, mean, var = z_p[:B, :L], mean_p[:B, :L], var_p[:B, :L]
    else:
        z, mean, var = z_p, mean_p, var_p

    return z, StochasticData(z=z, mean=mean, variance=var,
                             use_mode=False, forced_latent=None)


class GaussianStochasticModulePallas:
    """Concrete Gaussian dense realization of StochasticModule, Pallas-backed."""

    def __init__(self, in_shape, latent_features, top, key):
        self._in_shape = in_shape if isinstance(in_shape, tuple) else (in_shape,)
        self.latent_features = latent_features
        self.top = top
        self._out_shape = (latent_features,)

        d_in = int(math.prod(self._in_shape))
        L = latent_features
        Lp = _round_up(L, 128)
        Dp = d_in if d_in <= _RESIDENT_K_MAX else _round_up(d_in, _TILE_K)
        self._lp = Lp
        self._d_in = d_in
        self._dp = Dp

        k1, k2 = jax.random.split(key)
        scale = 1.0 / math.sqrt(d_in)
        # Linear(in_features, 2 * latent_features) split into two heads (f32 reference).
        self.w_mu = jax.random.normal(k1, (d_in, L), jnp.float32) * scale
        self.w_lv = jax.random.normal(k2, (d_in, L), jnp.float32) * scale
        self.b_mu = jnp.zeros((L,), jnp.float32)
        self.b_lv = jnp.zeros((L,), jnp.float32)

        # Kernel parameters: fused + lane/K padded [Dp, 2*Lp]; 0.5 folded into
        # the logvar head; bf16 matmul operands, f32 bias.
        w_fused = jnp.zeros((Dp, 2 * Lp), jnp.float32)
        w_fused = w_fused.at[:d_in, :L].set(self.w_mu)
        w_fused = w_fused.at[:d_in, Lp:Lp + L].set(0.5 * self.w_lv)
        b_fused = jnp.zeros((1, 2 * Lp), jnp.float32)
        b_fused = b_fused.at[0, :L].set(self.b_mu)
        b_fused = b_fused.at[0, Lp:Lp + L].set(0.5 * self.b_lv)
        self.w_fused_bf16 = w_fused.astype(jnp.bfloat16)
        self.b_fused = b_fused

    @property
    def in_shape(self):
        return self._in_shape

    @property
    def out_shape(self):
        return self._out_shape

    def infer(self, x, rng_key):
        # posterior forward pass (inference=True, sample=True)
        # TODO(synk): sample=False / use_mode / forced_latent branches are
        # host-level control flow and are not kernelized.
        B = x.shape[0]
        x2d = x.reshape(B, -1)
        return gaussian_stochastic_forward(
            x2d, self.w_fused_bf16, self.b_fused, rng_key, self.latent_features
        )


if __name__ == "__main__":
    key = jax.random.PRNGKey(0)
    k_param, k_x, k_eps = jax.random.split(key, 3)

    batch = 2
    in_features = 32
    latent_features = 16

    module = GaussianStochasticModulePallas(
        in_shape=in_features, latent_features=latent_features, top=False, key=k_param
    )

    x = jax.random.normal(k_x, (batch, in_features), jnp.float32)

    z, data = module.infer(x, rng_key=k_eps)
    jax.block_until_ready(z)
    jax.block_until_ready(data.mean)
    jax.block_until_ready(data.variance)

    # Pure-JAX f32 reference (kernel matmul runs in bf16 -> loosened tolerance).
    mu_ref = x @ module.w_mu + module.b_mu
    lv_ref = x @ module.w_lv + module.b_lv
    var_ref = jnp.exp(lv_ref)

    assert z.shape == (batch, latent_features)
    assert data.mean.shape == (batch, latent_features)
    assert data.variance.shape == (batch, latent_features)
    assert bool(jnp.allclose(data.mean, mu_ref, rtol=5e-2, atol=5e-2)), "mean mismatch"
    assert bool(jnp.allclose(data.variance, var_ref, rtol=1e-1, atol=5e-2)), "variance mismatch"

    # eps is generated on the host at the lane-padded shape (Bp=8, Lp=128 for
    # this config); reproduce it and verify the reparameterization exactly.
    eps_host = jax.random.normal(k_eps, (8, 128), jnp.float32)[:batch, :latent_features]
    z_expected = data.mean + jnp.sqrt(data.variance) * eps_host
    assert bool(jnp.all(jnp.isfinite(z))), "non-finite sample"
    assert bool(jnp.allclose(z, z_expected, rtol=1e-3, atol=1e-3)), "reparameterization mismatch"

    print("KERNEL_OK")
</pallas_src>

<mosaic_0001>
module attributes {stable_mosaic.version = 11 : i64} {
  func.func @_gaussian_stochastic_kernel(%arg0: i32, %arg1: i32, %arg2: memref<8x32xf32, #tpu.memory_space<vmem>>, %arg3: memref<32x256xbf16, #tpu.memory_space<vmem>>, %arg4: memref<1x256xf32, #tpu.memory_space<vmem>>, %arg5: memref<8x128xf32, #tpu.memory_space<vmem>>, %arg6: memref<8x128xf32, #tpu.memory_space<vmem>>, %arg7: memref<8x128xf32, #tpu.memory_space<vmem>>, %arg8: memref<8x128xf32, #tpu.memory_space<vmem>>, %arg9: memref<8x256xf32, #tpu.memory_space<vmem>>) attributes {dimension_semantics = [#tpu.dimension_semantics<parallel>, #tpu.dimension_semantics<arbitrary>], iteration_bounds = array<i64: 1, 1>, scalar_prefetch = 0 : i64, scratch_operands = 1 : i64, tpu.core_type = #tpu.core_type<tc>, window_params = [{transform_indices = @transform_0, window_bounds = array<i64: 8, 32>}, {transform_indices = @transform_1, window_bounds = array<i64: 32, 256>}, {pipeline_mode = #tpu.pipeline_mode<synchronous>, transform_indices = @transform_2, window_bounds = array<i64: 1, 256>}, {transform_indices = @transform_3, window_bounds = array<i64: 8, 128>}, {transform_indices = @transform_4, window_bounds = array<i64: 8, 128>}, {transform_indices = @transform_5, window_bounds = array<i64: 8, 128>}, {transform_indices = @transform_6, window_bounds = array<i64: 8, 128>}]} {
    %c0_i32 = arith.constant 0 : i32
    %0 = arith.cmpi eq, %arg1, %c0_i32 : i32
    %1 = arith.extui %0 : i1 to i32
    %c0_i32_0 = arith.constant 0 : i32
    %2 = arith.cmpi ne, %1, %c0_i32_0 : i32
    scf.if %2 {
      %cst_10 = arith.constant 0.000000e+00 : f32
      %13 = vector.broadcast %cst_10 : f32 to vector<8x256xf32>
      %c0_11 = arith.constant 0 : index
      %c0_12 = arith.constant 0 : index
      %14 = vector.load %arg9[%c0_11, %c0_12] : memref<8x256xf32, #tpu.memory_space<vmem>>, vector<8x256xf32>
      tpu.vector_store %arg9[%c0_11, %c0_12], %13 {strides = array<i32>} : memref<8x256xf32, #tpu.memory_space<vmem>>, vector<8x256xf32>,
    } else {
    }
    %c0 = arith.constant 0 : index
    %c0_1 = arith.constant 0 : index
    %3 = vector.load %arg9[%c0, %c0_1] : memref<8x256xf32, #tpu.memory_space<vmem>>, vector<8x256xf32>
    %c0_2 = arith.constant 0 : index
    %c0_3 = arith.constant 0 : index
    %4 = vector.load %arg2[%c0_2, %c0_3] : memref<8x32xf32, #tpu.memory_space<vmem>>, vector<8x32xf32>
    %5 = arith.truncf %4 : vector<8x32xf32> to vector<8x32xbf16>
    %c0_4 = arith.constant 0 : index
    %c0_5 = arith.constant 0 : index
    %6 = vector.load %arg3[%c0_4, %c0_5] : memref<32x256xbf16, #tpu.memory_space<vmem>>, vector<32x256xbf16>
    %cst = arith.constant dense<0.000000e+00> : vector<8x256xf32>
    %7 = tpu.matmul %5, %6, %cst {dimension_numbers = #tpu.dot_dimension_numbers<[1], [0], [0], [1], [0, 0, 1, 1], [], []>} : vector<8x32xbf16>, vector<32x256xbf16>, vector<8x256xf32> -> vector<8x256xf32>
    %8 = arith.addf %3, %7 : vector<8x256xf32>
    %c0_6 = arith.constant 0 : index
    %c0_7 = arith.constant 0 : index
    %9 = vector.load %arg9[%c0_6, %c0_7] : memref<8x256xf32, #tpu.memory_space<vmem>>, vector<8x256xf32>
    tpu.vector_store %arg9[%c0_6, %c0_7], %8 {strides = array<i32>} : memref<8x256xf32, #tpu.memory_space<vmem>>, vector<8x256xf32>,
    %c0_i32_8 = arith.constant 0 : i32
    %10 = arith.cmpi eq, %arg1, %c0_i32_8 : i32
    %11 = arith.extui %10 : i1 to i32
    %c0_i32_9 = arith.constant 0 : i32
    %12 = arith.cmpi ne, %11, %c0_i32_9 : i32
    scf.if %12 {
      %c0_10 = arith.constant 0 : index
      %c0_11 = arith.constant 0 : index
      %13 = vector.load %arg9[%c0_10, %c0_11] : memref<8x256xf32, #tpu.memory_space<vmem>>, vector<8x256xf32>
      %c0_12 = arith.constant 0 : index
      %c0_13 = arith.constant 0 : index
      %14 = vector.load %arg4[%c0_12, %c0_13] : memref<1x256xf32, #tpu.memory_space<vmem>>, vector<1x256xf32>
      %15 = vector.broadcast %14 : vector<1x256xf32> to vector<8x256xf32>
      %16 = arith.addf %13, %15 : vector<8x256xf32>
      %17 = vector.extract_strided_slice %16 {offsets = [0, 0], sizes = [8, 128], strides = [1, 1]} : vector<8x256xf32> to vector<8x128xf32>
      %18 = vector.extract_strided_slice %16 {offsets = [0, 128], sizes = [8, 128], strides = [1, 1]} : vector<8x256xf32> to vector<8x128xf32>
      %19 = math.exp %18 : vector<8x128xf32>
      %c0_14 = arith.constant 0 : index
      %c0_15 = arith.constant 0 : index
      %20 = vector.load %arg5[%c0_14, %c0_15] : memref<8x128xf32, #tpu.memory_space<vmem>>, vector<8x128xf32>
      %21 = arith.mulf %19, %20 : vector<8x128xf32>
      %22 = arith.addf %17, %21 : vector<8x128xf32>
      %c0_16 = arith.constant 0 : index
      %c0_17 = arith.constant 0 : index
      %23 = vector.load %arg6[%c0_16, %c0_17] : memref<8x128xf32, #tpu.memory_space<vmem>>, vector<8x128xf32>
      tpu.vector_store %arg6[%c0_16, %c0_17], %22 {strides = array<i32>} : memref<8x128xf32, #tpu.memory_space<vmem>>, vector<8x128xf32>,
      %c0_18 = arith.constant 0 : index
      %c0_19 = arith.constant 0 : index
      %24 = vector.load %arg7[%c0_18, %c0_19] : memref<8x128xf32, #tpu.memory_space<vmem>>, vector<8x128xf32>
      tpu.vector_store %arg7[%c0_18, %c0_19], %17 {strides = array<i32>} : memref<8x128xf32, #tpu.memory_space<vmem>>, vector<8x128xf32>,
      %25 = arith.mulf %19, %19 : vector<8x128xf32>
      %c0_20 = arith.constant 0 : index
      %c0_21 = arith.constant 0 : index
      %26 = vector.load %arg8[%c0_20, %c0_21] : memref<8x128xf32, #tpu.memory_space<vmem>>, vector<8x128xf32>
      tpu.vector_store %arg8[%c0_20, %c0_21], %25 {strides = array<i32>} : memref<8x128xf32, #tpu.memory_space<vmem>>, vector<8x128xf32>,
    } else {
    }
    return
  }
  func.func @transform_0(%arg0: i32, %arg1: i32) -> (i32, i32) {
    %c0_i32 = arith.constant 0 : i32
    return %arg0, %arg1 : i32, i32
  }
  func.func @transform_1(%arg0: i32, %arg1: i32) -> (i32, i32) {
    %c0_i32 = arith.constant 0 : i32
    %c0_i32_0 = arith.constant 0 : i32
    return %arg1, %c0_i32 : i32, i32
  }
  func.func @transform_2(%arg0: i32, %arg1: i32) -> (i32, i32) {
    %c0_i32 = arith.constant 0 : i32
    %c0_i32_0 = arith.constant 0 : i32
    %c0_i32_1 = arith.constant 0 : i32
    return %c0_i32, %c0_i32_0 : i32, i32
  }
  func.func @transform_3(%arg0: i32, %arg1: i32) -> (i32, i32) {
    %c0_i32 = arith.constant 0 : i32
    %c0_i32_0 = arith.constant 0 : i32
    return %arg0, %c0_i32 : i32, i32
  }
  func.func @transform_4(%arg0: i32, %arg1: i32) -> (i32, i32) {
    %c0_i32 = arith.constant 0 : i32
    %c0_i32_0 = arith.constant 0 : i32
    return %arg0, %c0_i32 : i32, i32
  }
  func.func @transform_5(%arg0: i32, %arg1: i32) -> (i32, i32) {
    %c0_i32 = arith.constant 0 : i32
    %c0_i32_0 = arith.constant 0 : i32
    return %arg0, %c0_i32 : i32, i32
  }
  func.func @transform_6(%arg0: i32, %arg1: i32) -> (i32, i32) {
    %c0_i32 = arith.constant 0 : i32
    %c0_i32_0 = arith.constant 0 : i32
    return %arg0, %c0_i32 : i32, i32
  }
}

</mosaic_0001>

<llo_original>
// kernel: tpu_custom_call.1
$region0: #{tpu_custom_call.1}
  #allocation0 [shape = 'u32[]', space=smem, size = 0x4, offset = 0x4, fixed_abs, tag = 'smem constant byte address 0x4 - core index']
  #allocation1 [shape = 'u32[72,128]{1,0:T(1,128)}', space=vmem, size = 0x9000, scoped, tag = 'internal scratch']
  #allocation2 [shape = 'f32[8,256]{1,0:T(8,128)}', space=vmem, size = 0x2000, scoped, tag = 'scratch operand']
  %s0 = inlined_call_operand.hbm [shape: f32[8,32], index: 0, kind: input, shape index: {}]
  %s1 = inlined_call_operand.hbm [shape: bf16[32,256], index: 1, kind: input, shape index: {}]
  %s2 = inlined_call_operand.hbm [shape: f32[1,256], index: 2, kind: input, shape index: {}]
  %s3 = inlined_call_operand.hbm [shape: f32[8,128], index: 3, kind: input, shape index: {}]
  %s4 = inlined_call_operand.hbm [shape: f32[8,128], index: 4, kind: output, shape index: {0}]
  %s5 = inlined_call_operand.hbm [shape: f32[8,128], index: 5, kind: output, shape index: {1}]
  %s6 = inlined_call_operand.hbm [shape: f32[8,128], index: 6, kind: output, shape index: {2}]
  %7 = xla_tuple %s4, %s5, %s6
  %s8 = sld [smem:[#allocation0]]
  $region66: #{tpu_custom_call.1} parent=0
    _
  %s10 = ssub.s32 1, %s8
  %s11 = scalar_select 0, %s10, %s8
  $region1: #{tpu_custom_call.1} parent=0
    #allocation3 [shape = 'u8[4096]{0}', space=vmem, size = 0x1000, scoped, tag = 'input window, operand 0, single buffered']
    #allocation4 [shape = 's32[1]{0}', space=sflag, size = 0x4, scoped, tag = 'scoped memory for tpu_custom_call.1']
    #allocation5 [shape = 's32[1]{0}', space=sflag, size = 0x4, scoped, tag = 'scoped memory for tpu_custom_call.1']
    #allocation6 [shape = 'u8[16384]{0}', space=vmem, size = 0x4000, scoped, tag = 'input window, operand 1, single buffered']
    #allocation7 [shape = 's32[1]{0}', space=sflag, size = 0x4, scoped, tag = 'scoped memory for tpu_custom_call.1']
    #allocation8 [shape = 'u8[1024]{0}', space=vmem, size = 0x400, scoped, tag = 'input window, operand 2, single buffered']
    #allocation9 [shape = 'u8[4096]{0}', space=vmem, size = 0x1000, scoped, tag = 'input window, operand 3, single buffered']
    #allocation10 [shape = 's32[1]{0}', space=sflag, size = 0x4, scoped, tag = 'scoped memory for tpu_custom_call.1']
    #allocation11 [shape = 'u8[4096]{0}', space=vmem, size = 0x1000, scoped, tag = 'output window, operand 0, single buffered']
    #allocation12 [shape = 'u8[4096]{0}', space=vmem, size = 0x1000, scoped, tag = 'output window, operand 1, single buffered']
    #allocation13 [shape = 's32[1]{0}', space=sflag, size = 0x4, scoped, tag = 'scoped memory for tpu_custom_call.1']
    #allocation14 [shape = 'u8[4096]{0}', space=vmem, size = 0x1000, scoped, tag = 'output window, operand 2, single buffered']
    %12 = vsyncpa [#allocation4], 0
    %13 = vsyncpa [#allocation7], 0
    %14 = vsyncpa [#allocation10], 0
    %15 = vsyncpa [#allocation5], 0
    %16 = vsyncpa [#allocation13], 0
    // Predicated region
    $region2: #{tpu_custom_call.1} parent=1 // pred_check
      _
    $region3: #{tpu_custom_call.1} parent=1 // pred_check_branch
      %18 = sbr.rel (0) target = $region5
    $region4: #{tpu_custom_call.1} parent=1 // pred_region
      %20 = vsyncadd [#allocation4], 0
      %s22 = sshll.u32 %s0, 4
      %s23 = int_to_ptr.hbm [resolvable:$true] %s22
      %s24 = sshll.u32 [#allocation3], 4
      %s25 = int_to_ptr.vmem [resolvable:$true] %s24
      %27 = dma.hbm_to_vmem [thread:$0]  %s23, 128, %s25, [#allocation4]
    $region5: #{tpu_custom_call.1} parent=1 // pred_fallthru
      _
    // Predicated region
    $region6: #{tpu_custom_call.1} parent=1 // pred_check
      _
    $region7: #{tpu_custom_call.1} parent=1 // pred_check_branch
      %29 = sbr.rel (0) target = $region9
    $region8: #{tpu_custom_call.1} parent=1 // pred_region
      %31 = vsyncadd [#allocation7], 0
      %s32 = sshll.u32 %s1, 4
      %s33 = int_to_ptr.hbm [resolvable:$true] %s32
      %s34 = sshll.u32 [#allocation6], 4
      %s35 = int_to_ptr.vmem [resolvable:$true] %s34
      %40 = dma.hbm_to_vmem [thread:$0]  %s33, 512, %s35, [#allocation7], 128, 128, 8
    $region9: #{tpu_custom_call.1} parent=1 // pred_fallthru
      _
    // Predicated region
    $region10: #{tpu_custom_call.1} parent=1 // pred_check
      _
    $region11: #{tpu_custom_call.1} parent=1 // pred_check_branch
      %42 = sbr.rel (0) target = $region13
    $region12: #{tpu_custom_call.1} parent=1 // pred_region
      %44 = vsyncadd [#allocation7], 0
      %s46 = sshll.u32 %s2, 4
      %s47 = int_to_ptr.hbm [resolvable:$true] %s46
      %s48 = sshll.u32 [#allocation8], 4
      %s49 = int_to_ptr.vmem [resolvable:$true] %s48
      %51 = dma.hbm_to_vmem [thread:$0]  %s47, 32, %s49, [#allocation7]
    $region13: #{tpu_custom_call.1} parent=1 // pred_fallthru
      _
    // Predicated region
    $region14: #{tpu_custom_call.1} parent=1 // pred_check
      _
    $region15: #{tpu_custom_call.1} parent=1 // pred_check_branch
      %53 = sbr.rel (0) target = $region17
    $region16: #{tpu_custom_call.1} parent=1 // pred_region
      %55 = vsyncadd [#allocation10], 0
      %s57 = sshll.u32 %s3, 4
      %s58 = int_to_ptr.hbm [resolvable:$true] %s57
      %s59 = sshll.u32 [#allocation9], 4
      %s60 = int_to_ptr.vmem [resolvable:$true] %s59
      %62 = dma.hbm_to_vmem [thread:$0]  %s58, 128, %s60, [#allocation10]
    $region17: #{tpu_custom_call.1} parent=1 // pred_fallthru
      _
    // Predicated region
    $region18: #{tpu_custom_call.1} parent=1 // pred_check
      _
    $region19: #{tpu_custom_call.1} parent=1 // pred_check_branch
      %64 = sbr.rel (0) target = $region21
    $region20: #{tpu_custom_call.1} parent=1 // pred_region
      %66 = dma.done [#allocation4], 128
    $region21: #{tpu_custom_call.1} parent=1 // pred_fallthru
      _
    // Predicated region
    $region22: #{tpu_custom_call.1} parent=1 // pred_check
      _
    $region23: #{tpu_custom_call.1} parent=1 // pred_check_branch
      %68 = sbr.rel (0) target = $region25
    $region24: #{tpu_custom_call.1} parent=1 // pred_region
      %70 = dma.done [#allocation7], 512
    $region25: #{tpu_custom_call.1} parent=1 // pred_fallthru
      _
    // Predicated region
    $region26: #{tpu_custom_call.1} parent=1 // pred_check
      _
    $region27: #{tpu_custom_call.1} parent=1 // pred_check_branch
      %72 = sbr.rel (0) target = $region29
    $region28: #{tpu_custom_call.1} parent=1 // pred_region
      %74 = dma.done [#allocation7], 32
    $region29: #{tpu_custom_call.1} parent=1 // pred_fallthru
      _
    // Predicated region
    $region30: #{tpu_custom_call.1} parent=1 // pred_check
      _
    $region31: #{tpu_custom_call.1} parent=1 // pred_check_branch
      %76 = sbr.rel (0) target = $region33
    $region32: #{tpu_custom_call.1} parent=1 // pred_region
      %78 = dma.done [#allocation10], 128
    $region33: #{tpu_custom_call.1} parent=1 // pred_fallthru
      _
    %p80 = scmp.eq.s32.totalorder 0, 0
    // Predicated region
    $region34: #{tpu_custom_call.1} parent=1 // pred_check
      %p81 = pneg %p80
    $region35: #{tpu_custom_call.1} parent=1 // pred_check_branch
      %83 = sbr.rel (%p81) target = $region37
    $region36: #{tpu_custom_call.1} parent=1 // pred_region
      %84 = vst [vmem:[#allocation2] sm:$0xff] 0.0
      %85 = vst [vmem:[#allocation2 + $0x8] sm:$0xff] 0.0
    $region37: #{tpu_custom_call.1} parent=1 // pred_fallthru
      _
    %v86 = vld [vmem:[#allocation2] sm:$0xff]
    %v87 = vld [vmem:[#allocation2 + $0x8] sm:$0xff]
    %v88 = vld [vmem:[#allocation3] sm:$0xff]
    %v89 = vpack.c.bf16 %v88, %v88
    %v90 = vld [vmem:[#allocation6] sm:$0xff]
    %v91 = vld [vmem:[#allocation6 + $0x8] sm:$0xff]
    %v92 = vld [vmem:[#allocation6 + $0x10] sm:$0xff]
    %v93 = vld [vmem:[#allocation6 + $0x18] sm:$0xff]
    %v98 = vunpack.c.l.b16 %v90
    %v99 = vunpack.c.h.b16 %v90
    %v100 = vunpack.c.l.b16 %v91
    %v101 = vunpack.c.h.b16 %v91
    %v102 = vunpack.c.l.b16 %v92
    %v103 = vunpack.c.h.b16 %v92
    %v104 = vunpack.c.l.b16 %v93
    %v105 = vunpack.c.h.b16 %v93
    %v106 = vpack.c.b16 %v100, %v98
    %v107 = vpack.c.b16 %v101, %v99
    %v108 = vpack.c.b16 %v104, %v102
    %v109 = vpack.c.b16 %v105, %v103
    %vm114 = vcmask 261120
    %v116 = vsel %vm114, %v89, 0
    %118 = vmatpush.bf16.msra.mxu0 0
    %119 = vmatpush.bf16.msra.mxu0 0
    %120 = vmatpush.bf16.msra.mxu0 0
    %121 = vmatpush.bf16.msra.mxu0 0
    %122 = vmatpush.bf16.msra.mxu0 0
    %123 = vmatpush.bf16.msra.mxu0 0
    %124 = vmatpush.bf16.msra.mxu0 %v108
    %125 = vmatpush.bf16.msra.mxu0 %v106
    %126 = vmatmul.bf16.gmra.mxu0 %v116
    %v127 = vpop.f32.mrf.mxu0
    %v128 = vadd.f32 0.0, %v127
    %v129 = vpop.f32.mrf.mxu0
    %130 = vdwg.mxu0
    %131 = vmatpush.bf16.msra.mxu0 0
    %132 = vmatpush.bf16.msra.mxu0 0
    %133 = vmatpush.bf16.msra.mxu0 0
    %134 = vmatpush.bf16.msra.mxu0 0
    %135 = vmatpush.bf16.msra.mxu0 0
    %136 = vmatpush.bf16.msra.mxu0 0
    %137 = vmatpush.bf16.msra.mxu0 %v109
    %138 = vmatpush.bf16.msra.mxu0 %v107
    %139 = vmatmul.bf16.gmra.mxu0 %v116
    %v140 = vpop.f32.mrf.mxu0
    %v141 = vadd.f32 0.0, %v140
    %v142 = vpop.f32.mrf.mxu0
    %143 = vdwg.mxu0
    %v144 = vadd.f32 %v86, %v128
    %v145 = vadd.f32 %v87, %v141
    %146 = vst [vmem:[#allocation2] sm:$0xff] %v144
    %147 = vst [vmem:[#allocation2 + $0x8] sm:$0xff] %v145
    // Predicated region
    $region38: #{tpu_custom_call.1} parent=1 // pred_check
      %p148 = pneg %p80
    $region39: #{tpu_custom_call.1} parent=1 // pred_check_branch
      %150 = sbr.rel (%p148) target = $region41
    $region40: #{tpu_custom_call.1} parent=1 // pred_region
      %v151 = vld [vmem:[#allocation2] sm:$0xff]
      %v152 = vld [vmem:[#allocation2 + $0x8] sm:$0xff]
      %v153 = vld [vmem:[#allocation8] sm:$0x3]
      %v155 = vperm.slane %v153, 0
      %v156 = vperm.slane %v153, 1
      %v159 = vadd.f32 %v151, %v155
      %v160 = vadd.f32 %v152, %v156
      %v161 = vmul.f32 %v160, 1.442695
      %v162 = vpow.pop %v161
      %v163 = vld [vmem:[#allocation9] sm:$0xff]
      %v164 = vmul.f32 %v162, %v163
      %v165 = vadd.f32 %v159, %v164
      %166 = vst [vmem:[#allocation11] sm:$0xff] %v165
      %167 = vst [vmem:[#allocation12] sm:$0xff] %v159
      %v168 = vmul.f32 %v162, %v162
      %169 = vst [vmem:[#allocation14] sm:$0xff] %v168
    $region41: #{tpu_custom_call.1} parent=1 // pred_fallthru
      _
    // Predicated region
    $region42: #{tpu_custom_call.1} parent=1 // pred_check
      _
    $region43: #{tpu_custom_call.1} parent=1 // pred_check_branch
      %171 = sbr.rel (0) target = $region45
    $region44: #{tpu_custom_call.1} parent=1 // pred_region
      %173 = vsyncadd [#allocation5], 0
      %s175 = sshll.u32 [#allocation11], 4
      %s176 = int_to_ptr.vmem [resolvable:$true] %s175
      %s177 = sshll.u32 %s4, 4
      %s178 = int_to_ptr.hbm [resolvable:$true] %s177
      %180 = dma.vmem_to_hbm [thread:$0]  %s176, 128, %s178, [#allocation5]
    $region45: #{tpu_custom_call.1} parent=1 // pred_fallthru
      _
    // Predicated region
    $region46: #{tpu_custom_call.1} parent=1 // pred_check
      _
    $region47: #{tpu_custom_call.1} parent=1 // pred_check_branch
      %182 = sbr.rel (0) target = $region49
    $region48: #{tpu_custom_call.1} parent=1 // pred_region
      %184 = vsyncadd [#allocation13], 0
      %s186 = sshll.u32 [#allocation12], 4
      %s187 = int_to_ptr.vmem [resolvable:$true] %s186
      %s188 = sshll.u32 %s5, 4
      %s189 = int_to_ptr.hbm [resolvable:$true] %s188
      %191 = dma.vmem_to_hbm [thread:$0]  %s187, 128, %s189, [#allocation13]
    $region49: #{tpu_custom_call.1} parent=1 // pred_fallthru
      _
    // Predicated region
    $region50: #{tpu_custom_call.1} parent=1 // pred_check
      _
    $region51: #{tpu_custom_call.1} parent=1 // pred_check_branch
      %193 = sbr.rel (0) target = $region53
    $region52: #{tpu_custom_call.1} parent=1 // pred_region
      %195 = vsyncadd [#allocation13], 0
      %s197 = sshll.u32 [#allocation14], 4
      %s198 = int_to_ptr.vmem [resolvable:$true] %s197
      %s199 = sshll.u32 %s6, 4
      %s200 = int_to_ptr.hbm [resolvable:$true] %s199
      %202 = dma.vmem_to_hbm [thread:$0]  %s198, 128, %s200, [#allocation13]
    $region53: #{tpu_custom_call.1} parent=1 // pred_fallthru
      _
    // Predicated region
    $region54: #{tpu_custom_call.1} parent=1 // pred_check
      _
    $region55: #{tpu_custom_call.1} parent=1 // pred_check_branch
      %204 = sbr.rel (0) target = $region57
    $region56: #{tpu_custom_call.1} parent=1 // pred_region
      %206 = dma.done [#allocation5], 128
    $region57: #{tpu_custom_call.1} parent=1 // pred_fallthru
      _
    // Predicated region
    $region58: #{tpu_custom_call.1} parent=1 // pred_check
      _
    $region59: #{tpu_custom_call.1} parent=1 // pred_check_branch
      %208 = sbr.rel (0) target = $region61
    $region60: #{tpu_custom_call.1} parent=1 // pred_region
      %210 = dma.done [#allocation13], 128
    $region61: #{tpu_custom_call.1} parent=1 // pred_fallthru
      _
    // Predicated region
    $region62: #{tpu_custom_call.1} parent=1 // pred_check
      _
    $region63: #{tpu_custom_call.1} parent=1 // pred_check_branch
      %212 = sbr.rel (0) target = $region65
    $region64: #{tpu_custom_call.1} parent=1 // pred_region
      %214 = dma.done [#allocation13], 128
    $region65: #{tpu_custom_call.1} parent=1 // pred_fallthru
      _
    %215 = vsyncpa [#allocation4], 1
    %216 = vsyncpa [#allocation7], 1
    %217 = vsyncpa [#allocation10], 1
    %218 = vsyncpa [#allocation5], 1
    %219 = vsyncpa [#allocation13], 1

</llo_original>
